<compile_context>
chip_gen: v5e
topology: v5e:2x2
jax: 0.10.0
libtpu: 0.0.40
codegen_flags: <defaults>
</compile_context>

<pallas_src>
import functools
import math

import jax
import jax.numpy as jnp
import numpy as np
from jax import lax
from jax.experimental import pallas as pl
from jax.experimental.pallas import tpu as pltpu


def _variance_kernel(neg2mu_ref, bias_ref, x_ref, out_ref, *, chunk_rows, unroll):
    """Accumulate sum over pixels & clusters of relu(||x - mu_k||^2 - delta_v)^2.

    neg2mu_ref : SMEM (K, C) f32           -2 * cluster centers
    bias_ref   : SMEM (K,)   f32           ||mu_k||^2 - delta_v
    x_ref      : VMEM (C, tile_rows, 128)  pixel tile of one batch element
    out_ref    : VMEM (1, 1, chunk_rows, 128) f32  per-(batch, split) partials
    """
    @pl.when(pl.program_id(2) == 0)
    def _init():
        out_ref[...] = jnp.zeros_like(out_ref)

    n_clusters, n_channels = neg2mu_ref.shape
    tile_rows = x_ref.shape[1]
    n_chunks = tile_rows // chunk_rows

    # Hoist the K*C + K scalar SMEM reads out of the hot loop.
    neg2mu = [[neg2mu_ref[k, c] for c in range(n_channels)]
              for k in range(n_clusters)]
    bias = [bias_ref[k] for k in range(n_clusters)]

    def chunk_body(j, acc):
        r0 = pl.multiple_of(j * chunk_rows, chunk_rows)
        # One small slab per channel; everything below stays in vregs.
        xs = [x_ref[c, pl.ds(r0, chunk_rows), :].astype(jnp.float32)
              for c in range(n_channels)]
        # ||x||^2 once per chunk, shared across all K clusters.
        xsq = xs[0] * xs[0]
        for c in range(1, n_channels):
            xsq = xsq + xs[c] * xs[c]
        for k in range(n_clusters):
            # ||x - mu_k||^2 - delta_v = ||x||^2 - 2 x.mu_k + (||mu_k||^2 - dv)
            d = xsq + bias[k]
            for c in range(n_channels):
                d = d + xs[c] * neg2mu[k][c]
            t = jnp.maximum(d, 0.0)
            acc = acc + t * t
        return acc

    acc = lax.fori_loop(0, n_chunks, chunk_body,
                        jnp.zeros((chunk_rows, 128), jnp.float32),
                        unroll=unroll)
    # Tiny (chunk_rows, 128) read-modify-write per grid step.
    out_ref[0, 0] += acc


def _cdiv(a, b):
    return -(-a // b)


def _round_up(x, m):
    return _cdiv(x, m) * m


def _unroll_factor(n_chunks, cap=8):
    """Largest divisor of n_chunks that is <= cap (keeps fori_loop unroll exact)."""
    for u in range(min(n_chunks, cap), 0, -1):
        if n_chunks % u == 0:
            return u
    return 1


def discriminative_loss_pallas(embedding, clusters, *, alpha=1.0, beta=1.0,
                               gamma=0.001, delta_v=0.5, delta_distance=1.5,
                               target_block_bytes=2 * 1024 * 1024):
    """embedding: (N, C, H, W); clusters: (K, C). Returns the scalar loss."""
    embedding = jnp.asarray(embedding)
    clusters32 = jnp.asarray(clusters, dtype=jnp.float32)

    n, c, h, w = embedding.shape
    k = clusters32.shape[0]
    hw = h * w

    itemsize = jnp.dtype(embedding.dtype).itemsize
    row_align = {4: 8, 2: 16, 1: 32}.get(itemsize, 8)

    # --- balanced, padding-light tiling of the flattened pixel axis ----------
    r_raw = _cdiv(hw, 128)                                    # 128-lane rows needed
    target_rows = max(row_align, target_block_bytes // (c * 128 * itemsize))
    n_tiles = _cdiv(r_raw, target_rows)
    num_splits = 2 if n_tiles >= 2 else 1                     # v7x: 2 TensorCores
    n_tiles = _round_up(n_tiles, num_splits)
    tile_rows = _round_up(_cdiv(r_raw, n_tiles), row_align)   # pad <= align rows/tile
    chunk_rows = math.gcd(tile_rows, 32)                      # vreg-sized hot-loop chunk
    n_chunks = tile_rows // chunk_rows
    r_total = n_tiles * tile_rows
    tiles_per_split = n_tiles // num_splits

    # Lane/sublane-dense relayout; zero-pad the (small) tail.  Padded pixels are
    # x == 0 whose exact per-cluster contribution relu(||mu_k||^2 - delta_v)^2
    # is subtracted analytically below, so no in-kernel masking is needed.
    # TODO(synk): an in-kernel row mask would avoid the pad copy for heavily
    # ragged H*W; not worth it for the usual multiple-of-128 image sizes.
    pad = r_total * 128 - hw
    x_flat = embedding.reshape(n, c, hw)
    if pad:
        x_flat = jnp.pad(x_flat, ((0, 0), (0, 0), (0, pad)))
    x = x_flat.reshape(n, c, r_total, 128)

    # Pre-folded cluster constants; they live in SMEM and are read as scalars.
    mu_sq = jnp.sum(clusters32 * clusters32, axis=1)          # (K,)
    neg2mu = -2.0 * clusters32                                # (K, C)
    bias = mu_sq - jnp.float32(delta_v)                       # (K,)

    kernel = functools.partial(_variance_kernel, chunk_rows=chunk_rows,
                               unroll=_unroll_factor(n_chunks))

    var_partials = pl.pallas_call(
        kernel,
        out_shape=jax.ShapeDtypeStruct((n, num_splits, chunk_rows, 128),
                                       jnp.float32),
        grid_spec=pltpu.PrefetchScalarGridSpec(
            num_scalar_prefetch=0,
            grid=(n, num_splits, tiles_per_split),
            in_specs=[
                pl.BlockSpec(memory_space=pltpu.MemorySpace.SMEM),   # -2*mu (K,C)
                pl.BlockSpec(memory_space=pltpu.MemorySpace.SMEM),   # ||mu||^2-dv (K,)
                pl.BlockSpec((pl.Squeezed(), c, tile_rows, 128),     # streamed pixels
                             lambda b, p, i: (b, 0, p * tiles_per_split + i, 0)),
            ],
            out_specs=pl.BlockSpec((1, 1, chunk_rows, 128),
                                   lambda b, p, i: (b, p, 0, 0)),
        ),
        compiler_params=pltpu.CompilerParams(
            dimension_semantics=("parallel", "parallel", "arbitrary"),
            vmem_limit_bytes=32 * 1024 * 1024),
    )(neg2mu, bias, x)

    # Exact correction for the zero-padded pixels.
    pad_correction = jnp.float32(n * pad) * jnp.sum(jnp.maximum(bias, 0.0) ** 2)
    var_sum = jnp.sum(var_partials) - pad_correction
    # variance: per-cluster mean over N*H*W pixels, then the quirky /(K+1) mean.
    var_loss = var_sum / jnp.float32(n * hw * (k + 1))

    # Cluster-only terms: O(K^2 * C) on a (K, C) array — negligible, plain JAX.
    diff = clusters32[:, None, :] - clusters32[None, :, :]
    pair_d = jnp.sum(diff * diff, axis=-1)                    # (K, K)
    pair_mask = jnp.triu(jnp.ones((k, k), dtype=bool), 1)
    dist_terms = jnp.where(
        pair_mask, jnp.maximum(2.0 * float(delta_distance) - pair_d, 0.0) ** 2, 0.0)
    n_pairs = k * (k - 1) // 2
    dist_loss = jnp.sum(dist_terms) / jnp.float32(n_pairs + 1)

    reg_loss = jnp.sum(clusters32 * clusters32) / jnp.float32(k + 1)

    return alpha * var_loss + beta * dist_loss + gamma * reg_loss


def discriminative_loss_ref(embedding, clusters, *, alpha=1.0, beta=1.0,
                            gamma=0.001, delta_v=0.5, delta_distance=1.5):
    """Plain-JAX transliteration of the PyTorch module (for verification)."""
    k = clusters.shape[0]
    var_terms = []
    for i in range(k):
        c = clusters[i].reshape(1, -1, 1, 1)
        d = jnp.sum((embedding - c) ** 2, axis=1)
        var_terms.append(jnp.mean(jnp.maximum(d - delta_v, 0.0) ** 2))
    var_loss = sum(var_terms) / (k + 1)

    dist_terms = []
    for a in range(k):
        for b in range(a + 1, k):
            dd = jnp.sum((clusters[a] - clusters[b]) ** 2)
            dist_terms.append(jnp.maximum(2.0 * delta_distance - dd, 0.0) ** 2)
    dist_loss = (sum(dist_terms) / (len(dist_terms) + 1)) if dist_terms else 0.0

    reg_loss = sum(jnp.sum(clusters[i] ** 2) for i in range(k)) / (k + 1)
    return alpha * var_loss + beta * dist_loss + gamma * reg_loss


if __name__ == "__main__":
    key = jax.random.PRNGKey(0)
    k_emb, k_clu = jax.random.split(key)

    # embedding: (N, C, H, W) = (2, 4, 16, 16); 3 cluster centers of dim C
    embedding = jax.random.normal(k_emb, (2, 4, 16, 16), dtype=jnp.float32)
    clusters = jax.random.normal(k_clu, (3, 4), dtype=jnp.float32)

    loss = jax.block_until_ready(jax.jit(discriminative_loss_pallas)(embedding, clusters))
    ref = jax.block_until_ready(discriminative_loss_ref(embedding, clusters))

    np.testing.assert_allclose(np.asarray(loss), np.asarray(ref), rtol=1e-4, atol=1e-5)
    print("KERNEL_OK")
</pallas_src>

<mosaic_0001>
module attributes {stable_mosaic.version = 11 : i64} {
  func.func @_variance_kernel(%arg0: i32, %arg1: i32, %arg2: i32, %arg3: memref<3x4xf32, #tpu.memory_space<smem>>, %arg4: memref<3xf32, #tpu.memory_space<smem>>, %arg5: memref<1x4x8x128xf32, #tpu.memory_space<vmem>>, %arg6: memref<1x1x8x128xf32, #tpu.memory_space<vmem>>) attributes {dimension_semantics = [#tpu.dimension_semantics<parallel>, #tpu.dimension_semantics<parallel>, #tpu.dimension_semantics<arbitrary>], iteration_bounds = array<i64: 2, 1, 1>, scalar_prefetch = 0 : i64, scratch_operands = 0 : i64, tpu.core_type = #tpu.core_type<tc>, window_params = [{transform_indices = @transform_0, window_bounds = array<i64: 3, 4>}, {transform_indices = @transform_1, window_bounds = array<i64: 3>}, {transform_indices = @transform_2, window_bounds = array<i64: 1, 4, 8, 128>}, {transform_indices = @transform_3, window_bounds = array<i64: 1, 1, 8, 128>}]} {
    %c0_i32 = arith.constant 0 : i32
    %0 = arith.cmpi eq, %arg2, %c0_i32 : i32
    %1 = arith.extui %0 : i1 to i32
    %c0_i32_0 = arith.constant 0 : i32
    %2 = arith.cmpi ne, %1, %c0_i32_0 : i32
    scf.if %2 {
      %cst_48 = arith.constant 0.000000e+00 : f32
      %100 = vector.broadcast %cst_48 : f32 to vector<1x1x8x128xf32>
      %c0_49 = arith.constant 0 : index
      %c0_50 = arith.constant 0 : index
      %c0_51 = arith.constant 0 : index
      %c0_52 = arith.constant 0 : index
      %101 = vector.load %arg6[%c0_49, %c0_50, %c0_51, %c0_52] : memref<1x1x8x128xf32, #tpu.memory_space<vmem>>, vector<1x1x8x128xf32>
      tpu.vector_store %arg6[%c0_49, %c0_50, %c0_51, %c0_52], %100 {strides = array<i32>} : memref<1x1x8x128xf32, #tpu.memory_space<vmem>>, vector<1x1x8x128xf32>,
    } else {
    }
    %c0 = arith.constant 0 : index
    %c0_1 = arith.constant 0 : index
    %3 = memref.load %arg3[%c0, %c0_1] : memref<3x4xf32, #tpu.memory_space<smem>>
    %c0_2 = arith.constant 0 : index
    %c1 = arith.constant 1 : index
    %4 = memref.load %arg3[%c0_2, %c1] : memref<3x4xf32, #tpu.memory_space<smem>>
    %c0_3 = arith.constant 0 : index
    %c2 = arith.constant 2 : index
    %5 = memref.load %arg3[%c0_3, %c2] : memref<3x4xf32, #tpu.memory_space<smem>>
    %c0_4 = arith.constant 0 : index
    %c3 = arith.constant 3 : index
    %6 = memref.load %arg3[%c0_4, %c3] : memref<3x4xf32, #tpu.memory_space<smem>>
    %c1_5 = arith.constant 1 : index
    %c0_6 = arith.constant 0 : index
    %7 = memref.load %arg3[%c1_5, %c0_6] : memref<3x4xf32, #tpu.memory_space<smem>>
    %c1_7 = arith.constant 1 : index
    %c1_8 = arith.constant 1 : index
    %8 = memref.load %arg3[%c1_7, %c1_8] : memref<3x4xf32, #tpu.memory_space<smem>>
    %c1_9 = arith.constant 1 : index
    %c2_10 = arith.constant 2 : index
    %9 = memref.load %arg3[%c1_9, %c2_10] : memref<3x4xf32, #tpu.memory_space<smem>>
    %c1_11 = arith.constant 1 : index
    %c3_12 = arith.constant 3 : index
    %10 = memref.load %arg3[%c1_11, %c3_12] : memref<3x4xf32, #tpu.memory_space<smem>>
    %c2_13 = arith.constant 2 : index
    %c0_14 = arith.constant 0 : index
    %11 = memref.load %arg3[%c2_13, %c0_14] : memref<3x4xf32, #tpu.memory_space<smem>>
    %c2_15 = arith.constant 2 : index
    %c1_16 = arith.constant 1 : index
    %12 = memref.load %arg3[%c2_15, %c1_16] : memref<3x4xf32, #tpu.memory_space<smem>>
    %c2_17 = arith.constant 2 : index
    %c2_18 = arith.constant 2 : index
    %13 = memref.load %arg3[%c2_17, %c2_18] : memref<3x4xf32, #tpu.memory_space<smem>>
    %c2_19 = arith.constant 2 : index
    %c3_20 = arith.constant 3 : index
    %14 = memref.load %arg3[%c2_19, %c3_20] : memref<3x4xf32, #tpu.memory_space<smem>>
    %c0_21 = arith.constant 0 : index
    %15 = memref.load %arg4[%c0_21] : memref<3xf32, #tpu.memory_space<smem>>
    %c1_22 = arith.constant 1 : index
    %16 = memref.load %arg4[%c1_22] : memref<3xf32, #tpu.memory_space<smem>>
    %c2_23 = arith.constant 2 : index
    %17 = memref.load %arg4[%c2_23] : memref<3xf32, #tpu.memory_space<smem>>
    %cst = arith.constant 0.000000e+00 : f32
    %18 = vector.broadcast %cst : f32 to vector<8x128xf32>
    %c0_i32_24 = arith.constant 0 : i32
    %c8_i32 = arith.constant 8 : i32
    %19 = arith.muli %c0_i32_24, %c8_i32 : i32
    %20 = tpu.assume_multiple %19, 8 : i32
    %c0_25 = arith.constant 0 : index
    %c0_26 = arith.constant 0 : index
    %21 = arith.index_cast %20 : i32 to index
    %c0_27 = arith.constant 0 : index
    %22 = vector.load %arg5[%c0_25, %c0_26, %21, %c0_27] : memref<1x4x8x128xf32, #tpu.memory_space<vmem>>, vector<1x1x8x128xf32>
    %23 = vector.shape_cast %22 : vector<1x1x8x128xf32> to vector<8x128xf32>
    %c0_28 = arith.constant 0 : index
    %c1_29 = arith.constant 1 : index
    %24 = arith.index_cast %20 : i32 to index
    %c0_30 = arith.constant 0 : index
    %25 = vector.load %arg5[%c0_28, %c1_29, %24, %c0_30] : memref<1x4x8x128xf32, #tpu.memory_space<vmem>>, vector<1x1x8x128xf32>
    %26 = vector.shape_cast %25 : vector<1x1x8x128xf32> to vector<8x128xf32>
    %c0_31 = arith.constant 0 : index
    %c2_32 = arith.constant 2 : index
    %27 = arith.index_cast %20 : i32 to index
    %c0_33 = arith.constant 0 : index
    %28 = vector.load %arg5[%c0_31, %c2_32, %27, %c0_33] : memref<1x4x8x128xf32, #tpu.memory_space<vmem>>, vector<1x1x8x128xf32>
    %29 = vector.shape_cast %28 : vector<1x1x8x128xf32> to vector<8x128xf32>
    %c0_34 = arith.constant 0 : index
    %c3_35 = arith.constant 3 : index
    %30 = arith.index_cast %20 : i32 to index
    %c0_36 = arith.constant 0 : index
    %31 = vector.load %arg5[%c0_34, %c3_35, %30, %c0_36] : memref<1x4x8x128xf32, #tpu.memory_space<vmem>>, vector<1x1x8x128xf32>
    %32 = vector.shape_cast %31 : vector<1x1x8x128xf32> to vector<8x128xf32>
    %33 = arith.mulf %23, %23 : vector<8x128xf32>
    %34 = arith.mulf %26, %26 : vector<8x128xf32>
    %35 = arith.addf %33, %34 : vector<8x128xf32>
    %36 = arith.mulf %29, %29 : vector<8x128xf32>
    %37 = arith.addf %35, %36 : vector<8x128xf32>
    %38 = arith.mulf %32, %32 : vector<8x128xf32>
    %39 = arith.addf %37, %38 : vector<8x128xf32>
    %40 = vector.broadcast %15 : f32 to vector<8x128xf32>
    %41 = arith.addf %39, %40 : vector<8x128xf32>
    %42 = vector.broadcast %3 : f32 to vector<8x128xf32>
    %43 = arith.mulf %23, %42 : vector<8x128xf32>
    %44 = arith.addf %41, %43 : vector<8x128xf32>
    %45 = vector.broadcast %4 : f32 to vector<8x128xf32>
    %46 = arith.mulf %26, %45 : vector<8x128xf32>
    %47 = arith.addf %44, %46 : vector<8x128xf32>
    %48 = vector.broadcast %5 : f32 to vector<8x128xf32>
    %49 = arith.mulf %29, %48 : vector<8x128xf32>
    %50 = arith.addf %47, %49 : vector<8x128xf32>
    %51 = vector.broadcast %6 : f32 to vector<8x128xf32>
    %52 = arith.mulf %32, %51 : vector<8x128xf32>
    %53 = arith.addf %50, %52 : vector<8x128xf32>
    %cst_37 = arith.constant 0.000000e+00 : f32
    %54 = vector.broadcast %cst_37 : f32 to vector<8x128xf32>
    %55 = arith.maximumf %53, %54 : vector<8x128xf32>
    %56 = arith.mulf %55, %55 : vector<8x128xf32>
    %57 = arith.addf %18, %56 : vector<8x128xf32>
    %58 = vector.broadcast %16 : f32 to vector<8x128xf32>
    %59 = arith.addf %39, %58 : vector<8x128xf32>
    %60 = vector.broadcast %7 : f32 to vector<8x128xf32>
    %61 = arith.mulf %23, %60 : vector<8x128xf32>
    %62 = arith.addf %59, %61 : vector<8x128xf32>
    %63 = vector.broadcast %8 : f32 to vector<8x128xf32>
    %64 = arith.mulf %26, %63 : vector<8x128xf32>
    %65 = arith.addf %62, %64 : vector<8x128xf32>
    %66 = vector.broadcast %9 : f32 to vector<8x128xf32>
    %67 = arith.mulf %29, %66 : vector<8x128xf32>
    %68 = arith.addf %65, %67 : vector<8x128xf32>
    %69 = vector.broadcast %10 : f32 to vector<8x128xf32>
    %70 = arith.mulf %32, %69 : vector<8x128xf32>
    %71 = arith.addf %68, %70 : vector<8x128xf32>
    %cst_38 = arith.constant 0.000000e+00 : f32
    %72 = vector.broadcast %cst_38 : f32 to vector<8x128xf32>
    %73 = arith.maximumf %71, %72 : vector<8x128xf32>
    %74 = arith.mulf %73, %73 : vector<8x128xf32>
    %75 = arith.addf %57, %74 : vector<8x128xf32>
    %76 = vector.broadcast %17 : f32 to vector<8x128xf32>
    %77 = arith.addf %39, %76 : vector<8x128xf32>
    %78 = vector.broadcast %11 : f32 to vector<8x128xf32>
    %79 = arith.mulf %23, %78 : vector<8x128xf32>
    %80 = arith.addf %77, %79 : vector<8x128xf32>
    %81 = vector.broadcast %12 : f32 to vector<8x128xf32>
    %82 = arith.mulf %26, %81 : vector<8x128xf32>
    %83 = arith.addf %80, %82 : vector<8x128xf32>
    %84 = vector.broadcast %13 : f32 to vector<8x128xf32>
    %85 = arith.mulf %29, %84 : vector<8x128xf32>
    %86 = arith.addf %83, %85 : vector<8x128xf32>
    %87 = vector.broadcast %14 : f32 to vector<8x128xf32>
    %88 = arith.mulf %32, %87 : vector<8x128xf32>
    %89 = arith.addf %86, %88 : vector<8x128xf32>
    %cst_39 = arith.constant 0.000000e+00 : f32
    %90 = vector.broadcast %cst_39 : f32 to vector<8x128xf32>
    %91 = arith.maximumf %89, %90 : vector<8x128xf32>
    %92 = arith.mulf %91, %91 : vector<8x128xf32>
    %93 = arith.addf %75, %92 : vector<8x128xf32>
    %c1_i32 = arith.constant 1 : i32
    %c0_40 = arith.constant 0 : index
    %c0_41 = arith.constant 0 : index
    %c0_42 = arith.constant 0 : index
    %c0_43 = arith.constant 0 : index
    %94 = vector.load %arg6[%c0_40, %c0_41, %c0_42, %c0_43] : memref<1x1x8x128xf32, #tpu.memory_space<vmem>>, vector<1x1x8x128xf32>
    %95 = vector.shape_cast %94 : vector<1x1x8x128xf32> to vector<8x128xf32>
    %96 = arith.addf %95, %93 : vector<8x128xf32>
    %c0_44 = arith.constant 0 : index
    %c0_45 = arith.constant 0 : index
    %c0_46 = arith.constant 0 : index
    %c0_47 = arith.constant 0 : index
    %97 = vector.load %arg6[%c0_44, %c0_45, %c0_46, %c0_47] : memref<1x1x8x128xf32, #tpu.memory_space<vmem>>, vector<1x1x8x128xf32>
    %98 = vector.shape_cast %97 : vector<1x1x8x128xf32> to vector<8x128xf32>
    %99 = vector.shape_cast %96 : vector<8x128xf32> to vector<1x1x8x128xf32>
    tpu.vector_store %arg6[%c0_44, %c0_45, %c0_46, %c0_47], %99 {strides = array<i32>} : memref<1x1x8x128xf32, #tpu.memory_space<vmem>>, vector<1x1x8x128xf32>,
    return
  }
  func.func @transform_0(%arg0: i32, %arg1: i32, %arg2: i32) -> (i32, i32) {
    %c0_i32 = arith.constant 0 : i32
    %c0_i32_0 = arith.constant 0 : i32
    %c0_i32_1 = arith.constant 0 : i32
    return %c0_i32, %c0_i32_0 : i32, i32
  }
  func.func @transform_1(%arg0: i32, %arg1: i32, %arg2: i32) -> i32 {
    %c0_i32 = arith.constant 0 : i32
    %c0_i32_0 = arith.constant 0 : i32
    return %c0_i32 : i32
  }
  func.func @transform_2(%arg0: i32, %arg1: i32, %arg2: i32) -> (i32, i32, i32, i32) {
    %c1_i32 = arith.constant 1 : i32
    %0 = arith.muli %arg1, %c1_i32 : i32
    %1 = arith.addi %0, %arg2 : i32
    %c0_i32 = arith.constant 0 : i32
    %c0_i32_0 = arith.constant 0 : i32
    %c0_i32_1 = arith.constant 0 : i32
    return %arg0, %c0_i32, %1, %c0_i32_0 : i32, i32, i32, i32
  }
  func.func @transform_3(%arg0: i32, %arg1: i32, %arg2: i32) -> (i32, i32, i32, i32) {
    %c0_i32 = arith.constant 0 : i32
    %c0_i32_0 = arith.constant 0 : i32
    %c0_i32_1 = arith.constant 0 : i32
    return %arg0, %arg1, %c0_i32, %c0_i32_0 : i32, i32, i32, i32
  }
}

</mosaic_0001>

<llo_original>
// kernel: discriminative_loss_pallas.1
$region0: #{discriminative_loss_pallas.1}
  #allocation0 [shape = 'u32[]', space=smem, size = 0x4, offset = 0x4, fixed_abs, tag = 'smem constant byte address 0x4 - core index']
  #allocation1 [shape = 'u32[72,128]{1,0:T(1,128)}', space=vmem, size = 0x9000, scoped, tag = 'internal scratch']
  %s0 = inlined_call_operand.vmem [shape: f32[3,4], index: 0, kind: input, shape index: {}]
  %s1 = inlined_call_operand.vmem [shape: f32[3], index: 1, kind: input, shape index: {}]
  %s2 = inlined_call_operand.vmem [shape: f32[2,4,8,128], index: 2, kind: input, shape index: {}]
  %s3 = inlined_call_operand.vmem [shape: f32[2,1,8,128], index: 3, kind: output, shape index: {}]
  %s4 = sld [smem:[#allocation0]]
  $region57: #{discriminative_loss_pallas.1} parent=0
    _
  %s6 = ssub.s32 1, %s4
  %s7 = scalar_select 0, %s6, %s4
  $region1: #{discriminative_loss_pallas.1} parent=0
    #allocation2 [shape = 'u8[2048]{0}', space=smem, size = 0x800, scoped, tag = 'input window, operand 0, single buffered']
    #allocation3 [shape = 's32[2]{0}', space=sflag, size = 0x8, scoped, tag = 'scoped memory for discriminative_loss_pallas.1']
    #allocation4 [shape = 'u8[512]{0}', space=smem, size = 0x200, scoped, tag = 'input window, operand 1, single buffered']
    #allocation5 [shape = 's32[1]{0}', space=sflag, size = 0x4, scoped, tag = 'scoped memory for discriminative_loss_pallas.1']
    %8 = vsyncpa [#allocation3], 0
    %9 = vsyncpa [#allocation5], 0
    loop: start=0, step=1, limit=4
    $region2: #{discriminative_loss_pallas.1} parent=1 // loop_pre_header
      _
    $region3: #{discriminative_loss_pallas.1} parent=1 // loop_header
      %s11 = sphi 0, %s15
      %p12 = scmp.ge.s32.totalorder %s11, 4
      %s18 = sphi 0, %s37
      %s19 = sphi 0, %s33
      %s20 = sphi 0, %s29
      %s21 = sphi 0, %s18
      %s22 = sphi 0, %s19
      %s23 = sphi 0, %s20
      %s24 = sphi 0, %s21
      %s25 = sphi 0, %s22
      %s26 = sphi 0, %s23
      %s38 = sphi 0, %s38
      %s40 = sphi 0, %s38
      %s41 = sphi 0, %s40
      %s55 = sphi 0, %s41
      %s59 = sphi 0, %s59
      %s61 = sphi 0, %s59
      %s62 = sphi 0, %s61
      %s76 = sphi 0, %s62
      %s86 = sphi 0, %s88
      %s89 = sphi 0, %s86
      %s90 = sphi 0, %s89
      %s106 = sphi 0, %s90
      %s114 = sphi 0, %s116
      %s117 = sphi 0, %s114
      %s118 = sphi 0, %s117
      %s134 = sphi 0, %s118
    $region4: #{discriminative_loss_pallas.1} parent=1 // loop_header_branch
      %14 = sbr.rel (%p12) target = $region8
    $region5: #{discriminative_loss_pallas.1} parent=1 // loop_body
      %s16 = ssub.s32 %s11, 1
      %s17 = ssub.s32 %s11, 2
      %s27 = sadd.s32 1, %s20
      %p28 = scmp.ge.s32.totalorder %s27, 1
      %s29 = scalar_select %p28, 0, %s27
      %s30 = sadd.s32 1, %s19
      %s31 = scalar_select %p28, %s30, %s19
      %p32 = scmp.ge.s32.totalorder %s31, 1
      %s33 = scalar_select %p32, 0, %s31
      %s34 = sadd.s32 1, %s18
      %s35 = scalar_select %p32, %s34, %s18
      %p36 = scmp.ge.s32.totalorder %s35, 2
      %s37 = scalar_select %p36, 0, %s35
      %s39 = sadd.s32 %s38, 1
      %p42 = scmp.eq.s32.totalorder %s11, 1
      %p43 = scmp.ne.s32.totalorder %s38, %s40
      %p44 = scmp.eq.s32.totalorder %s11, 0
      %p45 = por %p43, %p44
      %p46 = scmp.ne.s32.totalorder %s38, %s40
      %p47 = scmp.eq.s32.totalorder %s16, 1
      %p48 = por %p46, %p47
      %p49 = scmp.ne.s32.totalorder %s40, %s41
      %p50 = scmp.eq.s32.totalorder %s16, 0
      %p51 = por %p49, %p50
      %p52 = scmp.ne.s32.totalorder %s40, %s41
      %p53 = scmp.eq.s32.totalorder %s17, 1
      %p54 = por %p52, %p53
      %p56 = scmp.ne.s32.totalorder %s41, %s55
      %p57 = scmp.eq.s32.totalorder %s17, 0
      %p58 = por %p56, %p57
      %s60 = sadd.s32 %s59, 1
      %p63 = scmp.eq.s32.totalorder %s11, 1
      %p64 = scmp.ne.s32.totalorder %s59, %s61
      %p65 = scmp.eq.s32.totalorder %s11, 0
      %p66 = por %p64, %p65
      %p67 = scmp.ne.s32.totalorder %s59, %s61
      %p68 = scmp.eq.s32.totalorder %s16, 1
      %p69 = por %p67, %p68
      %p70 = scmp.ne.s32.totalorder %s61, %s62
      %p71 = scmp.eq.s32.totalorder %s16, 0
      %p72 = por %p70, %p71
      %p73 = scmp.ne.s32.totalorder %s61, %s62
      %p74 = scmp.eq.s32.totalorder %s17, 1
      %p75 = por %p73, %p74
      %p77 = scmp.ne.s32.totalorder %s62, %s76
      %p78 = scmp.eq.s32.totalorder %s17, 0
      %p79 = por %p77, %p78
      %s80 = sadd.s32 %s19, %s20
      %s81 = sadd.s32 %s33, %s29
      %s82 = ssub.s32 %s18, %s37
      %s83 = ssub.s32 %s80, %s81
      %s84 = sor.u32 %s82, %s83
      %p85 = scmp.eq.s32.totalorder %s84, 0
      %s87 = sadd.s32 %s86, 1
      %s88 = scalar_select %p85, %s86, %s87
      %p91 = pneg %p85
      %p92 = scmp.eq.s32.totalorder %s11, 1
      %p93 = por %p91, %p92
      %p94 = scmp.ne.s32.totalorder %s86, %s89
      %p95 = scmp.eq.s32.totalorder %s11, 0
      %p96 = por %p94, %p95
      %p97 = scmp.ne.s32.totalorder %s86, %s89
      %p98 = scmp.eq.s32.totalorder %s16, 1
      %p99 = por %p97, %p98
      %p100 = scmp.ne.s32.totalorder %s89, %s90
      %p101 = scmp.eq.s32.totalorder %s16, 0
      %p102 = por %p100, %p101
      %p103 = scmp.ne.s32.totalorder %s89, %s90
      %p104 = scmp.eq.s32.totalorder %s17, 1
      %p105 = por %p103, %p104
      %p107 = scmp.ne.s32.totalorder %s90, %s106
      %p108 = scmp.eq.s32.totalorder %s17, 0
      %p109 = por %p107, %p108
      %s110 = ssub.s32 %s18, %s37
      %s111 = ssub.s32 %s19, %s33
      %s112 = sor.u32 %s110, %s111
      %p113 = scmp.eq.s32.totalorder %s112, 0
      %s115 = sadd.s32 %s114, 1
      %s116 = scalar_select %p113, %s114, %s115
      %p119 = pneg %p113
      %p120 = scmp.eq.s32.totalorder %s11, 1
      %p121 = por %p119, %p120
      %p122 = scmp.ne.s32.totalorder %s114, %s117
      %p123 = scmp.eq.s32.totalorder %s11, 0
      %p124 = por %p122, %p123
      %p125 = scmp.ne.s32.totalorder %s114, %s117
      %p126 = scmp.eq.s32.totalorder %s16, 1
      %p127 = por %p125, %p126
      %p128 = scmp.ne.s32.totalorder %s117, %s118
      %p129 = scmp.eq.s32.totalorder %s16, 0
      %p130 = por %p128, %p129
      %p131 = scmp.ne.s32.totalorder %s117, %s118
      %p132 = scmp.eq.s32.totalorder %s17, 1
      %p133 = por %p131, %p132
      %p135 = scmp.ne.s32.totalorder %s118, %s134
      %p136 = scmp.eq.s32.totalorder %s17, 0
      %p137 = por %p135, %p136
      %p138 = scmp.le.s32.totalorder 1, %s11
      %p139 = scmp.lt.s32.totalorder %s11, 3
      %p140 = pnand %p138, %p139
      %p141 = pneg %p140
      // Predicated region
      $region9: #{discriminative_loss_pallas.1} parent=5 // pred_check
        _
      $region10: #{discriminative_loss_pallas.1} parent=5 // pred_check_branch
        %143 = sbr.rel (%p140) target = $region12
      $region11: #{discriminative_loss_pallas.1} parent=5 // pred_region
        %s144 = ssub.s32 %s11, 1
        // Predicated region
        $region13: #{discriminative_loss_pallas.1} parent=11 // pred_check
          %p145 = pneg %p51
        $region14: #{discriminative_loss_pallas.1} parent=11 // pred_check_branch
          %147 = sbr.rel (%p145) target = $region16
        $region15: #{discriminative_loss_pallas.1} parent=11 // pred_region
          %149 = vsyncadd [#allocation3], 0
          %s151 = sshll.u32 %s0, 4
          %s152 = int_to_ptr.vmem [resolvable:$true] %s151
          %154 = dma.vmem_to_smem %s152, 64, [#allocation2], [#allocation3]
        $region16: #{discriminative_loss_pallas.1} parent=11 // pred_fallthru
          _
        // Predicated region
        $region17: #{discriminative_loss_pallas.1} parent=11 // pred_check
          %p155 = pneg %p72
        $region18: #{discriminative_loss_pallas.1} parent=11 // pred_check_branch
          %157 = sbr.rel (%p155) target = $region20
        $region19: #{discriminative_loss_pallas.1} parent=11 // pred_region
          %159 = vsyncadd [#allocation5], 0
          %s161 = sshll.u32 %s1, 4
          %s162 = int_to_ptr.vmem [resolvable:$true] %s161
          %164 = dma.vmem_to_smem %s162, 16, [#allocation4], [#allocation5]
        $region20: #{discriminative_loss_pallas.1} parent=11 // pred_fallthru
          _
      $region12: #{discriminative_loss_pallas.1} parent=5 // pred_fallthru
        _
      %p165 = scmp.lt.s32.totalorder %s11, 2
      // Predicated region
      $region21: #{discriminative_loss_pallas.1} parent=5 // pred_check
        %p166 = pneg %p165
      $region22: #{discriminative_loss_pallas.1} parent=5 // pred_check_branch
        %168 = sbr.rel (%p166) target = $region24
      $region23: #{discriminative_loss_pallas.1} parent=5 // pred_region
        // Predicated region
        $region25: #{discriminative_loss_pallas.1} parent=23 // pred_check
          %p169 = pneg %p96
        $region26: #{discriminative_loss_pallas.1} parent=23 // pred_check_branch
          %171 = sbr.rel (%p169) target = $region28
        $region27: #{discriminative_loss_pallas.1} parent=23 // pred_region
          %s172 = sadd.s32 %s19, %s20
          %p173 = scmp.lt.s32.totalorder %s18, 1
          %s174 = scalar_select %p173, %s18, 1
          %p175 = scmp.lt.s32.totalorder %s172, 0
          %s176 = scalar_select %p175, %s172, 0
          %s177 = smul.addr %s174, 4
          %s178 = sadd.s32 %s176, %s177
          %s179 = smul.addr %s178, 8
          %s180 = scalar_lea.vmem %s2, %s179
          %s181 = sadd.s32 %s19, %s20
        $region28: #{discriminative_loss_pallas.1} parent=23 // pred_fallthru
          _
      $region24: #{discriminative_loss_pallas.1} parent=5 // pred_fallthru
        _
      %p182 = scmp.le.s32.totalorder 1, %s11
      %p183 = scmp.lt.s32.totalorder %s11, 3
      %p184 = pnand %p182, %p183
      %p185 = pneg %p184
      // Predicated region
      $region29: #{discriminative_loss_pallas.1} parent=5 // pred_check
        _
      $region30: #{discriminative_loss_pallas.1} parent=5 // pred_check_branch
        %187 = sbr.rel (%p184) target = $region32
      $region31: #{discriminative_loss_pallas.1} parent=5 // pred_region
        %s188 = ssub.s32 %s11, 1
        // Predicated region
        $region33: #{discriminative_loss_pallas.1} parent=31 // pred_check
          %p189 = pneg %p51
        $region34: #{discriminative_loss_pallas.1} parent=31 // pred_check_branch
          %191 = sbr.rel (%p189) target = $region36
        $region35: #{discriminative_loss_pallas.1} parent=31 // pred_region
          %193 = dma.done [#allocation3], 64
        $region36: #{discriminative_loss_pallas.1} parent=31 // pred_fallthru
          _
        // Predicated region
        $region37: #{discriminative_loss_pallas.1} parent=31 // pred_check
          %p194 = pneg %p72
        $region38: #{discriminative_loss_pallas.1} parent=31 // pred_check_branch
          %196 = sbr.rel (%p194) target = $region40
        $region39: #{discriminative_loss_pallas.1} parent=31 // pred_region
          %198 = dma.done [#allocation5], 16
        $region40: #{discriminative_loss_pallas.1} parent=31 // pred_fallthru
          _
        %199 = sfence
        %p200 = pneg %p51
        %p201 = pneg %p48
        %p202 = pneg %p72
        %p203 = pneg %p69
        %s204 = sadd.s32 %s22, %s23
        %p205 = scmp.lt.s32.totalorder %s21, 1
        %s206 = scalar_select %p205, %s21, 1
        %p207 = scmp.lt.s32.totalorder %s204, 0
        %s208 = scalar_select %p207, %s204, 0
        %s209 = smul.addr %s206, 4
        %s210 = sadd.s32 %s208, %s209
        %s211 = smul.addr %s210, 8
        %s212 = scalar_lea.vmem %s2, %s211
        %p213 = pneg %p102
        %p214 = pneg %p99
        %p215 = pneg %p130
        %p216 = pneg %p127
        %p217 = scmp.lt.s32.totalorder %s21, 1
        %s218 = scalar_select %p217, %s21, 1
        %p219 = scmp.lt.s32.totalorder %s22, 0
        %s220 = scalar_select %p219, %s22, 0
        %s221 = sadd.s32 %s220, %s218
        %s222 = smul.addr %s221, 8
        %s223 = scalar_lea.vmem %s3, %s222
        %s224 = sadd.s32 %s22, %s23
        %p225 = scmp.lt.s32.totalorder %s21, 1
        %s226 = scalar_select %p225, %s21, 1
        %p227 = scmp.lt.s32.totalorder %s224, 0
        %s228 = scalar_select %p227, %s224, 0
        %s229 = smul.addr %s226, 4
        %s230 = sadd.s32 %s228, %s229
        %s231 = smul.addr %s230, 8
        %s232 = scalar_lea.vmem %s2, %s231
        %s233 = sadd.s32 %s22, %s23
        %p234 = scmp.lt.s32.totalorder %s21, 1
        %s235 = scalar_select %p234, %s21, 1
        %p236 = scmp.lt.s32.totalorder %s22, 0
        %s237 = scalar_select %p236, %s22, 0
        %s238 = sadd.s32 %s237, %s235
        %s239 = smul.addr %s238, 8
        %s240 = scalar_lea.vmem %s3, %s239
        %p241 = scmp.eq.s32.totalorder %s23, 0
        // Predicated region
        $region41: #{discriminative_loss_pallas.1} parent=31 // pred_check
          %p242 = pneg %p241
        $region42: #{discriminative_loss_pallas.1} parent=31 // pred_check_branch
          %244 = sbr.rel (%p242) target = $region44
        $region43: #{discriminative_loss_pallas.1} parent=31 // pred_region
          %245 = vst [vmem:[%s240] sm:$0xff] 0.0
        $region44: #{discriminative_loss_pallas.1} parent=31 // pred_fallthru
          _
        %s246 = sld [smem:[#allocation2]]
        %s247 = sld [smem:[#allocation2 + $0x1]]
        %s248 = sld [smem:[#allocation2 + $0x2]]
        %s249 = sld [smem:[#allocation2 + $0x3]]
        %s250 = sld [smem:[#allocation2 + $0x80]]
        %s251 = sld [smem:[#allocation2 + $0x81]]
        %s252 = sld [smem:[#allocation2 + $0x82]]
        %s253 = sld [smem:[#allocation2 + $0x83]]
        %s254 = sld [smem:[#allocation2 + $0x100]]
        %s255 = sld [smem:[#allocation2 + $0x101]]
        %s256 = sld [smem:[#allocation2 + $0x102]]
        %s257 = sld [smem:[#allocation2 + $0x103]]
        %s258 = sld [smem:[#allocation4]]
        %s259 = sld [smem:[#allocation4 + $0x1]]
        %s260 = sld [smem:[#allocation4 + $0x2]]
        %v261 = vld [vmem:[%s232] sm:$0xff]
        %s262 = sadd.s32 0, 8
        %s263 = scalar_lea.vmem %s232, %s262
        %v264 = vld [vmem:[%s263] sm:$0xff]
        %s265 = sadd.s32 0, 16
        %s266 = scalar_lea.vmem %s232, %s265
        %v267 = vld [vmem:[%s266] sm:$0xff]
        %s268 = sadd.s32 0, 24
        %s269 = scalar_lea.vmem %s232, %s268
        %v270 = vld [vmem:[%s269] sm:$0xff]
        %v271 = vmul.f32 %v261, %v261
        %v272 = vmul.f32 %v264, %v264
        %v273 = vadd.f32 %v271, %v272
        %v274 = vmul.f32 %v267, %v267
        %v275 = vadd.f32 %v273, %v274
        %v276 = vmul.f32 %v270, %v270
        %v277 = vadd.f32 %v275, %v276
        %v278 = vstv %s258
        %v279 = vadd.f32 %v277, %v278
        %v280 = vstv %s246
        %v281 = vmul.f32 %v261, %v280
        %v282 = vadd.f32 %v279, %v281
        %v283 = vstv %s247
        %v284 = vmul.f32 %v264, %v283
        %v285 = vadd.f32 %v282, %v284
        %v286 = vstv %s248
        %v287 = vmul.f32 %v267, %v286
        %v288 = vadd.f32 %v285, %v287
        %v289 = vstv %s249
        %v290 = vmul.f32 %v270, %v289
        %v291 = vadd.f32 %v288, %v290
        %v292 = vmax.f32 %v291, 0.0
        %v293 = vmul.f32 %v292, %v292
        %v294 = vadd.f32 %v293, 0.0
        %v295 = vstv %s259
        %v296 = vadd.f32 %v277, %v295
        %v297 = vstv %s250
        %v298 = vmul.f32 %v261, %v297
        %v299 = vadd.f32 %v296, %v298
        %v300 = vstv %s251
        %v301 = vmul.f32 %v264, %v300
        %v302 = vadd.f32 %v299, %v301
        %v303 = vstv %s252
        %v304 = vmul.f32 %v267, %v303
        %v305 = vadd.f32 %v302, %v304
        %v306 = vstv %s253
        %v307 = vmul.f32 %v270, %v306
        %v308 = vadd.f32 %v305, %v307
        %v309 = vmax.f32 %v308, 0.0
        %v310 = vmul.f32 %v309, %v309
        %v311 = vadd.f32 %v294, %v310
        %v312 = vstv %s260
        %v313 = vadd.f32 %v277, %v312
        %v314 = vstv %s254
        %v315 = vmul.f32 %v261, %v314
        %v316 = vadd.f32 %v313, %v315
        %v317 = vstv %s255
        %v318 = vmul.f32 %v264, %v317
        %v319 = vadd.f32 %v316, %v318
        %v320 = vstv %s256
        %v321 = vmul.f32 %v267, %v320
        %v322 = vadd.f32 %v319, %v321
        %v323 = vstv %s257
        %v324 = vmul.f32 %v270, %v323
        %v325 = vadd.f32 %v322, %v324
        %v326 = vmax.f32 %v325, 0.0
        %v327 = vmul.f32 %v326, %v326
        %v328 = vadd.f32 %v311, %v327
        %v329 = vld [vmem:[%s240] sm:$0xff]
        %v330 = vadd.f32 %v329, %v328
        %331 = vst [vmem:[%s240] sm:$0xff] %v330
        %p332 = scmp.lt.s32.totalorder %s21, 1
        %s333 = scalar_select %p332, %s21, 1
        %p334 = scmp.lt.s32.totalorder %s22, 0
        %s335 = scalar_select %p334, %s22, 0
        %s336 = sadd.s32 %s335, %s333
        %s337 = smul.addr %s336, 8
        %s338 = scalar_lea.vmem %s3, %s337
        // Predicated region
        $region45: #{discriminative_loss_pallas.1} parent=31 // pred_check
          %p339 = pneg %p127
        $region46: #{discriminative_loss_pallas.1} parent=31 // pred_check_branch
          %341 = sbr.rel (%p339) target = $region48
        $region47: #{discriminative_loss_pallas.1} parent=31 // pred_region
          _
        $region48: #{discriminative_loss_pallas.1} parent=31 // pred_fallthru
          _
      $region32: #{discriminative_loss_pallas.1} parent=5 // pred_fallthru
        _
      %p342 = scmp.le.s32.totalorder 2, %s11
      // Predicated region
      $region49: #{discriminative_loss_pallas.1} parent=5 // pred_check
        %p343 = pneg %p342
      $region50: #{discriminative_loss_pallas.1} parent=5 // pred_check_branch
        %345 = sbr.rel (%p343) target = $region52
      $region51: #{discriminative_loss_pallas.1} parent=5 // pred_region
        %s346 = ssub.s32 %s11, 2
        // Predicated region
        $region53: #{discriminative_loss_pallas.1} parent=51 // pred_check
          %p347 = pneg %p133
        $region54: #{discriminative_loss_pallas.1} parent=51 // pred_check_branch
          %349 = sbr.rel (%p347) target = $region56
        $region55: #{discriminative_loss_pallas.1} parent=51 // pred_region
          %p350 = scmp.lt.s32.totalorder %s24, 1
          %s351 = scalar_select %p350, %s24, 1
          %p352 = scmp.lt.s32.totalorder %s25, 0
          %s353 = scalar_select %p352, %s25, 0
          %s354 = sadd.s32 %s353, %s351
          %s355 = smul.addr %s354, 8
          %s356 = scalar_lea.vmem %s3, %s355
        $region56: #{discriminative_loss_pallas.1} parent=51 // pred_fallthru
          _
      $region52: #{discriminative_loss_pallas.1} parent=5 // pred_fallthru
        _
    $region6: #{discriminative_loss_pallas.1} parent=1 // loop_footer
      %s15 = sadd.s32 1, %s11
    $region7: #{discriminative_loss_pallas.1} parent=1 // loop_footer_branch
      %10 = sbr.rel target = $region3
    $region8: #{discriminative_loss_pallas.1} parent=1 // loop_exit
      _
    %357 = vsyncpa [#allocation3], 1
    %s358 = scalar_lea.sflag [#allocation3], 1
    %359 = vsyncpa %s358, 1
    %360 = vsyncpa [#allocation5], 1

</llo_original>
